<compile_context>
chip_gen: v6e
topology: v6e:2x2x1
jax: 0.10.0
libtpu: 0.0.40
codegen_flags: <defaults>
</compile_context>

<pallas_src>
import jax
import jax.numpy as jnp
import numpy as np
from jax.experimental import pallas as pl
from jax.experimental.pallas import tpu as pltpu


def _round_up(x: int, m: int) -> int:
    return (x + m - 1) // m * m


def _vmem_capacity_bytes(default: int = 64 << 20) -> int:
    # Conservative default = v7x's 64 MiB physical VMEM.
    try:
        info = pltpu.get_tpu_info()
        cap = getattr(info, "vmem_capacity_bytes", None)
        if cap:
            return int(cap)
    except Exception:
        pass
    return default


def _classifier_kernel(perm_ref, lev_ref, x_ref, w_ref, b_ref, o_ref):
    # perm_ref / lev_ref: scalar-prefetch SMEM refs (used only by index_maps).
    # x_ref: (tm, D)  xi dtype (f32 or bf16) -- cast to the MXU dtype in-kernel
    # w_ref: (D, tn)  compute dtype (bf16)
    # b_ref: (1, tn)  float32
    # o_ref: (tm, tn) output dtype
    x = x_ref[...].astype(w_ref.dtype)
    acc = jnp.dot(x, w_ref[...], preferred_element_type=jnp.float32)
    o_ref[...] = (acc + b_ref[...]).astype(o_ref.dtype)


def audio_classifier_forward(xi, levels, weights, biases, *,
                             compute_dtype=jnp.bfloat16,
                             out_dtype=None,
                             tm_target=None, tn_target=None):
    """
    xi:      [B, T, D]   float32/bfloat16
    levels:  [B]         int32    (which proj to use per batch element)
    weights: [L, D, N]   float32  (proj[l].weight transposed)
    biases:  [L, 1, N]   float32  (proj[l].bias with a broadcast axis)
    returns: [B, T, N]   out_dtype (default xi.dtype)
    """
    B, T, D = xi.shape
    L, D_w, N = weights.shape
    assert D_w == D, "weights must be [L, D, N]"
    out_dtype = xi.dtype if out_dtype is None else out_dtype

    comp_bytes = jnp.dtype(compute_dtype).itemsize
    out_bytes = jnp.dtype(out_dtype).itemsize
    x_hbm_bytes = jnp.dtype(xi.dtype).itemsize
    # Conservative (x tile kept in its native dtype; in-kernel cast).
    x_vmem_bytes = x_hbm_bytes

    # ---- VMEM-aware tile targets -----------------------------------------
    vmem_cap = _vmem_capacity_bytes()
    budget = int(vmem_cap * 0.45)          # double-buffered tiles + acc <= ~45% cap
    if tm_target is None:
        tm_target = 1024 if vmem_cap >= (96 << 20) else 512
    if tn_target is None:
        tn_target = 2048 if vmem_cap >= (96 << 20) else 1024

    def footprint(tm, tn):
        per = (tm * D * x_vmem_bytes      # x tile
               + D * tn * comp_bytes      # weight tile
               + tn * 4                   # bias tile
               + tm * tn * out_bytes)     # output tile
        return 2 * per + tm * tn * 4      # double-buffering + f32 accumulator

    def normalize(tm_c, tn_c):
        # Block shapes must be (8,128)-aligned OR equal to the full array dim.
        if tm_c >= T:
            tm_, t_pad_ = T, T                       # single T tile, no padding
        else:
            tm_ = max(16, (tm_c // 16) * 16)         # 16-aligned (bf16 sublanes)
            t_pad_ = _round_up(T, tm_)
        if tn_c >= N:
            tn_, n_pad_ = N, N                       # single N tile, no padding
        else:
            tn_ = max(128, (tn_c // 128) * 128)      # lane-aligned
            n_pad_ = _round_up(N, tn_)
        return tm_, tn_, t_pad_, n_pad_

    tm_c = T if T <= 2 * tm_target else tm_target
    tn_c = N if _round_up(N, 128) <= 2 * tn_target else tn_target
    while True:
        tm, tn, t_pad, n_pad = normalize(tm_c, tn_c)
        if footprint(tm, tn) <= budget or (tm <= 16 and tn <= 128):
            break
        # Shrink whichever tile dimension contributes more to the footprint.
        tn_scaling = D * tn * comp_bytes + tm * tn * (out_bytes + 2)
        tm_scaling = tm * D * x_vmem_bytes + tm * tn * (out_bytes + 2)
        if tn > 128 and (tn_scaling >= tm_scaling or tm <= 16):
            tn_c = tn // 2
        elif tm > 16:
            tm_c = tm // 2
        else:
            tn_c = tn // 2

    num_i = t_pad // tm    # T tiles
    num_j = n_pad // tn    # N tiles

    # ---- wrapper-side data prep (guarded: no-ops in the aligned case) ----
    x_in = xi
    # Only pre-cast x when it is re-read many times (per N tile); otherwise the
    # in-kernel cast avoids a full extra HBM read+write pass.
    if num_j > 2 and xi.dtype != compute_dtype:
        x_in = x_in.astype(compute_dtype)
    if t_pad != T:
        x_in = jnp.pad(x_in, ((0, 0), (0, t_pad - T), (0, 0)))

    w_in = weights if weights.dtype == compute_dtype else weights.astype(compute_dtype)
    b_in = biases if biases.dtype == jnp.float32 else biases.astype(jnp.float32)
    if n_pad != N:
        w_in = jnp.pad(w_in, ((0, 0), (0, 0), (0, n_pad - N)))
        b_in = jnp.pad(b_in, ((0, 0), (0, 0), (0, n_pad - N)))

    # ---- group batch elements by level (pure index indirection) ----------
    levels = levels.astype(jnp.int32)
    perm = jnp.argsort(levels).astype(jnp.int32)            # level-sorted order
    sorted_levels = jnp.take(levels, perm).astype(jnp.int32)

    # ---- grid + index maps ------------------------------------------------
    # num_j > 1: N-tile outermost so the (level, j) weight block is constant
    # across all consecutive same-level batch elements and all T tiles -> its
    # DMA is skipped.  num_j == 1: batch leads (better megacore split).
    if num_j > 1:
        grid = (num_j, B, num_i)
        x_map = lambda j, g, i, p, l: (p[g], i, 0)
        w_map = lambda j, g, i, p, l: (l[g], 0, j)
        bi_map = lambda j, g, i, p, l: (l[g], 0, j)
        o_map = lambda j, g, i, p, l: (p[g], i, j)
    else:
        grid = (B, num_j, num_i)
        x_map = lambda g, j, i, p, l: (p[g], i, 0)
        w_map = lambda g, j, i, p, l: (l[g], 0, j)
        bi_map = lambda g, j, i, p, l: (l[g], 0, j)
        o_map = lambda g, j, i, p, l: (p[g], i, j)

    grid_spec = pltpu.PrefetchScalarGridSpec(
        num_scalar_prefetch=2,
        grid=grid,
        in_specs=[
            pl.BlockSpec((None, tm, D), x_map),
            pl.BlockSpec((None, D, tn), w_map),
            pl.BlockSpec((None, 1, tn), bi_map),
        ],
        out_specs=pl.BlockSpec((None, tm, tn), o_map),
    )

    fp = footprint(tm, tn)
    vmem_limit = int(min(max(fp + (4 << 20), 32 << 20), vmem_cap - (8 << 20)))

    n_levels_used = min(L, B)
    cost = pl.CostEstimate(
        flops=2 * B * t_pad * D * n_pad,
        transcendentals=0,
        bytes_accessed=int(num_j * B * t_pad * D * x_hbm_bytes      # x (re-read per N tile)
                           + n_levels_used * D * n_pad * comp_bytes  # distinct-level weights
                           + n_levels_used * n_pad * 4               # biases
                           + B * t_pad * n_pad * out_bytes),         # output write
    )

    out = pl.pallas_call(
        _classifier_kernel,
        out_shape=jax.ShapeDtypeStruct((B, t_pad, n_pad), out_dtype),
        grid_spec=grid_spec,
        compiler_params=pltpu.CompilerParams(
            dimension_semantics=("parallel", "parallel", "parallel"),
            vmem_limit_bytes=vmem_limit,
        ),
        cost_estimate=cost,
    )(perm, sorted_levels, x_in, w_in, b_in)

    if t_pad != T or n_pad != N:
        out = out[:, :T, :N]
    return out


if __name__ == "__main__":
    # Small synthetic config consistent with the module's __init__.
    NUM_LEVELS = 4           # len(l_tokens)
    TOKEN_DIM = 32           # token_dim
    N_TOKENS = 16            # each entry of l_tokens (must be equal for stack)
    B = 2                    # number of (x, level) pairs in the forward
    T = 8                    # sequence length of each x

    key = jax.random.PRNGKey(0)
    k_x, k_w, k_b = jax.random.split(key, 3)

    # Parameters (shapes from nn.Linear(token_dim, n_tokens)):
    #   PyTorch weight: [n_tokens, token_dim] -> stored here as [L, D, N]
    #   PyTorch bias:   [n_tokens]            -> stored here as [L, 1, N]
    weights = jax.random.normal(k_w, (NUM_LEVELS, TOKEN_DIM, N_TOKENS),
                                dtype=jnp.float32) * 0.05
    biases = jax.random.normal(k_b, (NUM_LEVELS, 1, N_TOKENS),
                               dtype=jnp.float32) * 0.01

    xi = jax.random.normal(k_x, (B, T, TOKEN_DIM), dtype=jnp.float32)
    levels = jnp.array([2, 0], dtype=jnp.int32)   # one level per x in xi

    out = audio_classifier_forward(xi, levels, weights, biases)
    out = jax.block_until_ready(out)

    # Plain-JAX f32 reference of the PyTorch forward.  The kernel runs the
    # MXU with bf16 inputs / f32 accumulation, so compare with a tolerance
    # that covers bf16 rounding.
    ref = jnp.stack([
        xi[b] @ weights[int(levels[b])] + biases[int(levels[b]), 0]
        for b in range(B)
    ])
    assert out.shape == ref.shape
    np.testing.assert_allclose(np.asarray(out), np.asarray(ref),
                               rtol=1e-2, atol=1e-2)

    print("KERNEL_OK")
</pallas_src>

<mosaic_0001>
module attributes {stable_mosaic.version = 11 : i64} {
  func.func @_classifier_kernel(%arg0: i32, %arg1: i32, %arg2: i32, %arg3: memref<2xi32, #tpu.memory_space<smem>>, %arg4: memref<2xi32, #tpu.memory_space<smem>>, %arg5: memref<1x8x32xf32, #tpu.memory_space<vmem>>, %arg6: memref<1x32x16xbf16, #tpu.memory_space<vmem>>, %arg7: memref<1x1x16xf32, #tpu.memory_space<vmem>>, %arg8: memref<1x8x16xf32, #tpu.memory_space<vmem>>) attributes {dimension_semantics = [#tpu.dimension_semantics<parallel>, #tpu.dimension_semantics<parallel>, #tpu.dimension_semantics<parallel>], iteration_bounds = array<i64: 2, 1, 1>, scalar_prefetch = 2 : i64, scratch_operands = 0 : i64, tpu.core_type = #tpu.core_type<tc>, window_params = [{transform_indices = @transform_0, window_bounds = array<i64: 1, 8, 32>}, {transform_indices = @transform_1, window_bounds = array<i64: 1, 32, 16>}, {transform_indices = @transform_2, window_bounds = array<i64: 1, 1, 16>}, {transform_indices = @transform_3, window_bounds = array<i64: 1, 8, 16>}]} {
    %c0 = arith.constant 0 : index
    %c0_0 = arith.constant 0 : index
    %c0_1 = arith.constant 0 : index
    %0 = vector.load %arg5[%c0, %c0_0, %c0_1] : memref<1x8x32xf32, #tpu.memory_space<vmem>>, vector<1x8x32xf32>
    %1 = vector.shape_cast %0 : vector<1x8x32xf32> to vector<8x32xf32>
    %2 = arith.truncf %1 : vector<8x32xf32> to vector<8x32xbf16>
    %c0_2 = arith.constant 0 : index
    %c0_3 = arith.constant 0 : index
    %c0_4 = arith.constant 0 : index
    %3 = vector.load %arg6[%c0_2, %c0_3, %c0_4] : memref<1x32x16xbf16, #tpu.memory_space<vmem>>, vector<1x32x16xbf16>
    %4 = vector.shape_cast %3 : vector<1x32x16xbf16> to vector<32x16xbf16>
    %cst = arith.constant dense<0.000000e+00> : vector<8x16xf32>
    %5 = tpu.matmul %2, %4, %cst {dimension_numbers = #tpu.dot_dimension_numbers<[1], [0], [0], [1], [0, 0, 1, 1], [], []>} : vector<8x32xbf16>, vector<32x16xbf16>, vector<8x16xf32> -> vector<8x16xf32>
    %c0_5 = arith.constant 0 : index
    %c0_6 = arith.constant 0 : index
    %c0_7 = arith.constant 0 : index
    %6 = vector.load %arg7[%c0_5, %c0_6, %c0_7] : memref<1x1x16xf32, #tpu.memory_space<vmem>>, vector<1x1x16xf32>
    %7 = vector.shape_cast %6 : vector<1x1x16xf32> to vector<1x16xf32>
    %8 = vector.broadcast %7 : vector<1x16xf32> to vector<8x16xf32>
    %9 = arith.addf %5, %8 : vector<8x16xf32>
    %c0_8 = arith.constant 0 : index
    %c0_9 = arith.constant 0 : index
    %c0_10 = arith.constant 0 : index
    %10 = vector.load %arg8[%c0_8, %c0_9, %c0_10] : memref<1x8x16xf32, #tpu.memory_space<vmem>>, vector<1x8x16xf32>
    %11 = vector.shape_cast %10 : vector<1x8x16xf32> to vector<8x16xf32>
    %12 = vector.shape_cast %9 : vector<8x16xf32> to vector<1x8x16xf32>
    tpu.vector_store %arg8[%c0_8, %c0_9, %c0_10], %12 {strides = array<i32>} : memref<1x8x16xf32, #tpu.memory_space<vmem>>, vector<1x8x16xf32>,
    return
  }
  func.func @transform_0(%arg0: i32, %arg1: i32, %arg2: i32, %arg3: memref<2xi32, #tpu.memory_space<smem>>, %arg4: memref<2xi32, #tpu.memory_space<smem>>) -> (i32, i32, i32) {
    %0 = arith.index_cast %arg0 : i32 to index
    %1 = memref.load %arg3[%0] : memref<2xi32, #tpu.memory_space<smem>>
    %c0_i32 = arith.constant 0 : i32
    %c0_i32_0 = arith.constant 0 : i32
    return %1, %arg2, %c0_i32 : i32, i32, i32
  }
  func.func @transform_1(%arg0: i32, %arg1: i32, %arg2: i32, %arg3: memref<2xi32, #tpu.memory_space<smem>>, %arg4: memref<2xi32, #tpu.memory_space<smem>>) -> (i32, i32, i32) {
    %0 = arith.index_cast %arg0 : i32 to index
    %1 = memref.load %arg4[%0] : memref<2xi32, #tpu.memory_space<smem>>
    %c0_i32 = arith.constant 0 : i32
    %c0_i32_0 = arith.constant 0 : i32
    return %1, %c0_i32, %arg1 : i32, i32, i32
  }
  func.func @transform_2(%arg0: i32, %arg1: i32, %arg2: i32, %arg3: memref<2xi32, #tpu.memory_space<smem>>, %arg4: memref<2xi32, #tpu.memory_space<smem>>) -> (i32, i32, i32) {
    %0 = arith.index_cast %arg0 : i32 to index
    %1 = memref.load %arg4[%0] : memref<2xi32, #tpu.memory_space<smem>>
    %c0_i32 = arith.constant 0 : i32
    %c0_i32_0 = arith.constant 0 : i32
    return %1, %c0_i32, %arg1 : i32, i32, i32
  }
  func.func @transform_3(%arg0: i32, %arg1: i32, %arg2: i32, %arg3: memref<2xi32, #tpu.memory_space<smem>>, %arg4: memref<2xi32, #tpu.memory_space<smem>>) -> (i32, i32, i32) {
    %0 = arith.index_cast %arg0 : i32 to index
    %1 = memref.load %arg3[%0] : memref<2xi32, #tpu.memory_space<smem>>
    %c0_i32 = arith.constant 0 : i32
    return %1, %arg2, %arg1 : i32, i32, i32
  }
}

</mosaic_0001>

<llo_original>
// kernel: tpu_custom_call.1
$region0: #{tpu_custom_call.1}
  #allocation0 [shape = 'u32[]', space=smem, size = 0x4, offset = 0x4, fixed_abs, tag = 'smem constant byte address 0x4 - core index']
  #allocation1 [shape = 'u32[144,128]{1,0:T(1,128)}', space=vmem, size = 0x12000, scoped, tag = 'internal scratch']
  #allocation2 [shape = 's32[1]{0}', space=sflag, size = 0x4, scoped, tag = 'scoped memory for tpu_custom_call.1']
  #allocation3 [shape = 'u8[512]{0}', space=smem, size = 0x200, scoped, tag = 'prefetched SMEM operand 0']
  #allocation4 [shape = 'u8[512]{0}', space=smem, size = 0x200, scoped, tag = 'prefetched SMEM operand 1']
  %s0 = inlined_call_operand.vmem [shape: s32[2], index: 0, kind: input, shape index: {}]
  %s1 = inlined_call_operand.vmem [shape: s32[2], index: 1, kind: input, shape index: {}]
  %s2 = inlined_call_operand.vmem [shape: f32[2,8,32], index: 2, kind: input, shape index: {}]
  %s3 = inlined_call_operand.vmem [shape: bf16[4,32,16], index: 3, kind: input, shape index: {}]
  %s4 = inlined_call_operand.vmem [shape: f32[4,1,16], index: 4, kind: input, shape index: {}]
  %s5 = inlined_call_operand.hbm [shape: f32[2,8,16], index: 5, kind: output, shape index: {}]
  %s6 = sld [smem:[#allocation0]]
  $region45: #{tpu_custom_call.1} parent=0
    _
  %s8 = ssub.s32 1, %s6
  %s9 = scalar_select 0, %s8, %s6
  %s10 = sshll.u32 %s0, 4
  %s11 = int_to_ptr.vmem [resolvable:$true] %s10
  %13 = dma.vmem_to_smem %s11, 16, [#allocation3], [#allocation2]
  %s14 = sshll.u32 %s1, 4
  %s15 = int_to_ptr.vmem [resolvable:$true] %s14
  %17 = dma.vmem_to_smem %s15, 16, [#allocation4], [#allocation2]
  %18 = dma.done [#allocation2], 32
  %19 = sfence
  $region1: #{tpu_custom_call.1} parent=0
    #allocation5 [shape = 'u8[8192]{0}', space=vmem, size = 0x2000, scoped, tag = 'output window, operand 0']
    #allocation6 [shape = 's32[2]{0}', space=sflag, size = 0x8, scoped, tag = 'scoped memory for tpu_custom_call.1']
    %20 = vsyncpa [#allocation6], 0
    %s21 = scalar_lea.sflag [#allocation6], 1
    %22 = vsyncpa %s21, 0
    loop: start=0, step=1, limit=4
    $region2: #{tpu_custom_call.1} parent=1 // loop_pre_header
      _
    $region3: #{tpu_custom_call.1} parent=1 // loop_header
      %s24 = sphi 0, %s28
      %p25 = scmp.ge.s32.totalorder %s24, 4
      %s31 = sphi 0, %s50
      %s32 = sphi 0, %s46
      %s33 = sphi 0, %s42
      %s34 = sphi 0, %s31
      %s35 = sphi 0, %s32
      %s36 = sphi 0, %s33
      %s37 = sphi 0, %s34
      %s38 = sphi 0, %s35
      %s39 = sphi 0, %s36
      %s57 = sphi 0, %s59
      %s60 = sphi 0, %s57
      %s61 = sphi 0, %s60
      %s77 = sphi 0, %s61
      %s87 = sphi 0, %s89
      %s90 = sphi 0, %s87
      %s91 = sphi 0, %s90
      %s107 = sphi 0, %s91
      %s117 = sphi 0, %s119
      %s120 = sphi 0, %s117
      %s121 = sphi 0, %s120
      %s137 = sphi 0, %s121
      %s149 = sphi 0, %s151
      %s152 = sphi 0, %s149
      %s153 = sphi 0, %s152
      %s169 = sphi 0, %s153
    $region4: #{tpu_custom_call.1} parent=1 // loop_header_branch
      %27 = sbr.rel (%p25) target = $region8
    $region5: #{tpu_custom_call.1} parent=1 // loop_body
      %s29 = ssub.s32 %s24, 1
      %s30 = ssub.s32 %s24, 2
      %s40 = sadd.s32 1, %s33
      %p41 = scmp.ge.s32.totalorder %s40, 1
      %s42 = scalar_select %p41, 0, %s40
      %s43 = sadd.s32 1, %s32
      %s44 = scalar_select %p41, %s43, %s32
      %p45 = scmp.ge.s32.totalorder %s44, 1
      %s46 = scalar_select %p45, 0, %s44
      %s47 = sadd.s32 1, %s31
      %s48 = scalar_select %p45, %s47, %s31
      %p49 = scmp.ge.s32.totalorder %s48, 2
      %s50 = scalar_select %p49, 0, %s48
      %s51 = sld [smem:[#allocation3 + %s31]]
      %s52 = sld [smem:[#allocation3 + %s50]]
      %s53 = ssub.s32 %s51, %s52
      %s54 = ssub.s32 %s33, %s42
      %s55 = sor.u32 %s53, %s54
      %p56 = scmp.eq.s32.totalorder %s55, 0
      %s58 = sadd.s32 %s57, 1
      %s59 = scalar_select %p56, %s57, %s58
      %p62 = pneg %p56
      %p63 = scmp.eq.s32.totalorder %s24, 1
      %p64 = por %p62, %p63
      %p65 = scmp.ne.s32.totalorder %s57, %s60
      %p66 = scmp.eq.s32.totalorder %s24, 0
      %p67 = por %p65, %p66
      %p68 = scmp.ne.s32.totalorder %s57, %s60
      %p69 = scmp.eq.s32.totalorder %s29, 1
      %p70 = por %p68, %p69
      %p71 = scmp.ne.s32.totalorder %s60, %s61
      %p72 = scmp.eq.s32.totalorder %s29, 0
      %p73 = por %p71, %p72
      %p74 = scmp.ne.s32.totalorder %s60, %s61
      %p75 = scmp.eq.s32.totalorder %s30, 1
      %p76 = por %p74, %p75
      %p78 = scmp.ne.s32.totalorder %s61, %s77
      %p79 = scmp.eq.s32.totalorder %s30, 0
      %p80 = por %p78, %p79
      %s81 = sld [smem:[#allocation4 + %s31]]
      %s82 = sld [smem:[#allocation4 + %s50]]
      %s83 = ssub.s32 %s81, %s82
      %s84 = ssub.s32 %s32, %s46
      %s85 = sor.u32 %s83, %s84
      %p86 = scmp.eq.s32.totalorder %s85, 0
      %s88 = sadd.s32 %s87, 1
      %s89 = scalar_select %p86, %s87, %s88
      %p92 = pneg %p86
      %p93 = scmp.eq.s32.totalorder %s24, 1
      %p94 = por %p92, %p93
      %p95 = scmp.ne.s32.totalorder %s87, %s90
      %p96 = scmp.eq.s32.totalorder %s24, 0
      %p97 = por %p95, %p96
      %p98 = scmp.ne.s32.totalorder %s87, %s90
      %p99 = scmp.eq.s32.totalorder %s29, 1
      %p100 = por %p98, %p99
      %p101 = scmp.ne.s32.totalorder %s90, %s91
      %p102 = scmp.eq.s32.totalorder %s29, 0
      %p103 = por %p101, %p102
      %p104 = scmp.ne.s32.totalorder %s90, %s91
      %p105 = scmp.eq.s32.totalorder %s30, 1
      %p106 = por %p104, %p105
      %p108 = scmp.ne.s32.totalorder %s91, %s107
      %p109 = scmp.eq.s32.totalorder %s30, 0
      %p110 = por %p108, %p109
      %s111 = sld [smem:[#allocation4 + %s31]]
      %s112 = sld [smem:[#allocation4 + %s50]]
      %s113 = ssub.s32 %s111, %s112
      %s114 = ssub.s32 %s32, %s46
      %s115 = sor.u32 %s113, %s114
      %p116 = scmp.eq.s32.totalorder %s115, 0
      %s118 = sadd.s32 %s117, 1
      %s119 = scalar_select %p116, %s117, %s118
      %p122 = pneg %p116
      %p123 = scmp.eq.s32.totalorder %s24, 1
      %p124 = por %p122, %p123
      %p125 = scmp.ne.s32.totalorder %s117, %s120
      %p126 = scmp.eq.s32.totalorder %s24, 0
      %p127 = por %p125, %p126
      %p128 = scmp.ne.s32.totalorder %s117, %s120
      %p129 = scmp.eq.s32.totalorder %s29, 1
      %p130 = por %p128, %p129
      %p131 = scmp.ne.s32.totalorder %s120, %s121
      %p132 = scmp.eq.s32.totalorder %s29, 0
      %p133 = por %p131, %p132
      %p134 = scmp.ne.s32.totalorder %s120, %s121
      %p135 = scmp.eq.s32.totalorder %s30, 1
      %p136 = por %p134, %p135
      %p138 = scmp.ne.s32.totalorder %s121, %s137
      %p139 = scmp.eq.s32.totalorder %s30, 0
      %p140 = por %p138, %p139
      %s141 = sld [smem:[#allocation3 + %s31]]
      %s142 = sld [smem:[#allocation3 + %s50]]
      %s143 = ssub.s32 %s141, %s142
      %s144 = ssub.s32 %s33, %s42
      %s145 = sor.u32 %s143, %s144
      %s146 = ssub.s32 %s32, %s46
      %s147 = sor.u32 %s145, %s146
      %p148 = scmp.eq.s32.totalorder %s147, 0
      %s150 = sadd.s32 %s149, 1
      %s151 = scalar_select %p148, %s149, %s150
      %p154 = pneg %p148
      %p155 = scmp.eq.s32.totalorder %s24, 1
      %p156 = por %p154, %p155
      %p157 = scmp.ne.s32.totalorder %s149, %s152
      %p158 = scmp.eq.s32.totalorder %s24, 0
      %p159 = por %p157, %p158
      %p160 = scmp.ne.s32.totalorder %s149, %s152
      %p161 = scmp.eq.s32.totalorder %s29, 1
      %p162 = por %p160, %p161
      %p163 = scmp.ne.s32.totalorder %s152, %s153
      %p164 = scmp.eq.s32.totalorder %s29, 0
      %p165 = por %p163, %p164
      %p166 = scmp.ne.s32.totalorder %s152, %s153
      %p167 = scmp.eq.s32.totalorder %s30, 1
      %p168 = por %p166, %p167
      %p170 = scmp.ne.s32.totalorder %s153, %s169
      %p171 = scmp.eq.s32.totalorder %s30, 0
      %p172 = por %p170, %p171
      %p173 = scmp.le.s32.totalorder 1, %s24
      %p174 = scmp.lt.s32.totalorder %s24, 3
      %p175 = pnand %p173, %p174
      %p176 = pneg %p175
      // Predicated region
      $region9: #{tpu_custom_call.1} parent=5 // pred_check
        _
      $region10: #{tpu_custom_call.1} parent=5 // pred_check_branch
        %178 = sbr.rel (%p175) target = $region12
      $region11: #{tpu_custom_call.1} parent=5 // pred_region
        %s179 = ssub.s32 %s24, 1
      $region12: #{tpu_custom_call.1} parent=5 // pred_fallthru
        _
      %p180 = scmp.lt.s32.totalorder %s24, 2
      // Predicated region
      $region13: #{tpu_custom_call.1} parent=5 // pred_check
        %p181 = pneg %p180
      $region14: #{tpu_custom_call.1} parent=5 // pred_check_branch
        %183 = sbr.rel (%p181) target = $region16
      $region15: #{tpu_custom_call.1} parent=5 // pred_region
        // Predicated region
        $region17: #{tpu_custom_call.1} parent=15 // pred_check
          %p184 = pneg %p67
        $region18: #{tpu_custom_call.1} parent=15 // pred_check_branch
          %186 = sbr.rel (%p184) target = $region20
        $region19: #{tpu_custom_call.1} parent=15 // pred_region
          %s187 = sld [smem:[#allocation3 + %s31]]
          %p188 = scmp.lt.s32.totalorder %s187, 1
          %s189 = scalar_select %p188, %s187, 1
          %p190 = scmp.lt.s32.totalorder %s33, 0
          %s191 = scalar_select %p190, %s33, 0
          %s192 = sadd.s32 %s191, %s189
          %s193 = smul.addr %s192, 8
          %s194 = scalar_lea.vmem %s2, %s193
          %s195 = sld [smem:[#allocation3 + %s31]]
        $region20: #{tpu_custom_call.1} parent=15 // pred_fallthru
          _
        // Predicated region
        $region21: #{tpu_custom_call.1} parent=15 // pred_check
          %p196 = pneg %p97
        $region22: #{tpu_custom_call.1} parent=15 // pred_check_branch
          %198 = sbr.rel (%p196) target = $region24
        $region23: #{tpu_custom_call.1} parent=15 // pred_region
          %s199 = sld [smem:[#allocation4 + %s31]]
          %p200 = scmp.lt.s32.totalorder %s199, 3
          %s201 = scalar_select %p200, %s199, 3
          %p202 = scmp.lt.s32.totalorder %s32, 0
          %s203 = scalar_select %p202, %s32, 0
          %s204 = smul.addr %s201, 4
          %s205 = sadd.s32 %s203, %s204
          %s206 = smul.addr %s205, 4
          %s207 = scalar_lea.vmem %s3, %s206
          %s208 = sld [smem:[#allocation4 + %s31]]
        $region24: #{tpu_custom_call.1} parent=15 // pred_fallthru
          _
        // Predicated region
        $region25: #{tpu_custom_call.1} parent=15 // pred_check
          %p209 = pneg %p127
        $region26: #{tpu_custom_call.1} parent=15 // pred_check_branch
          %211 = sbr.rel (%p209) target = $region28
        $region27: #{tpu_custom_call.1} parent=15 // pred_region
          %s212 = sld [smem:[#allocation4 + %s31]]
          %p213 = scmp.lt.s32.totalorder %s212, 3
          %s214 = scalar_select %p213, %s212, 3
          %p215 = scmp.lt.s32.totalorder %s32, 0
          %s216 = scalar_select %p215, %s32, 0
          %s217 = sadd.s32 %s216, %s214
          %s218 = scalar_lea.vmem %s4, %s217
          %s219 = sld [smem:[#allocation4 + %s31]]
        $region28: #{tpu_custom_call.1} parent=15 // pred_fallthru
          _
      $region16: #{tpu_custom_call.1} parent=5 // pred_fallthru
        _
      %p220 = scmp.le.s32.totalorder 1, %s24
      %p221 = scmp.lt.s32.totalorder %s24, 3
      %p222 = pnand %p220, %p221
      %p223 = pneg %p222
      // Predicated region
      $region29: #{tpu_custom_call.1} parent=5 // pred_check
        _
      $region30: #{tpu_custom_call.1} parent=5 // pred_check_branch
        %225 = sbr.rel (%p222) target = $region32
      $region31: #{tpu_custom_call.1} parent=5 // pred_region
        %s226 = ssub.s32 %s24, 1
        %s227 = sld [smem:[#allocation3 + %s34]]
        %p228 = scmp.lt.s32.totalorder %s227, 1
        %s229 = scalar_select %p228, %s227, 1
        %p230 = scmp.lt.s32.totalorder %s36, 0
        %s231 = scalar_select %p230, %s36, 0
        %s232 = sadd.s32 %s231, %s229
        %s233 = smul.addr %s232, 8
        %s234 = scalar_lea.vmem %s2, %s233
        %p235 = pneg %p73
        %p236 = pneg %p70
        %s237 = sld [smem:[#allocation4 + %s34]]
        %p238 = scmp.lt.s32.totalorder %s237, 3
        %s239 = scalar_select %p238, %s237, 3
        %p240 = scmp.lt.s32.totalorder %s35, 0
        %s241 = scalar_select %p240, %s35, 0
        %s242 = smul.addr %s239, 4
        %s243 = sadd.s32 %s241, %s242
        %s244 = smul.addr %s243, 4
        %s245 = scalar_lea.vmem %s3, %s244
        %p246 = pneg %p103
        %p247 = pneg %p100
        %s248 = sld [smem:[#allocation4 + %s34]]
        %p249 = scmp.lt.s32.totalorder %s248, 3
        %s250 = scalar_select %p249, %s248, 3
        %p251 = scmp.lt.s32.totalorder %s35, 0
        %s252 = scalar_select %p251, %s35, 0
        %s253 = sadd.s32 %s252, %s250
        %s254 = scalar_lea.vmem %s4, %s253
        %p255 = pneg %p133
        %p256 = pneg %p130
        %p257 = pneg %p165
        %p258 = pneg %p162
        %s259 = sand.u32 %s152, 1
        %s260 = scalar_lea.sflag [#allocation6], %s259
        %s261 = sand.u32 %s152, 1
        %s262 = smul.addr %s261, 8
        %s263 = scalar_lea.vmem [#allocation5], %s262
        %s264 = sld [smem:[#allocation3 + %s34]]
        %p265 = scmp.lt.s32.totalorder %s264, 1
        %s266 = scalar_select %p265, %s264, 1
        %p267 = scmp.lt.s32.totalorder %s36, 0
        %s268 = scalar_select %p267, %s36, 0
        %s269 = sadd.s32 %s268, %s266
        %s270 = smul.addr %s269, 8
        %s271 = scalar_lea.vmem %s2, %s270
        %s272 = sld [smem:[#allocation3 + %s34]]
        %s273 = sld [smem:[#allocation4 + %s34]]
        %p274 = scmp.lt.s32.totalorder %s273, 3
        %s275 = scalar_select %p274, %s273, 3
        %p276 = scmp.lt.s32.totalorder %s35, 0
        %s277 = scalar_select %p276, %s35, 0
        %s278 = smul.addr %s275, 4
        %s279 = sadd.s32 %s277, %s278
        %s280 = smul.addr %s279, 4
        %s281 = scalar_lea.vmem %s3, %s280
        %s282 = sld [smem:[#allocation4 + %s34]]
        %s283 = sld [smem:[#allocation4 + %s34]]
        %p284 = scmp.lt.s32.totalorder %s283, 3
        %s285 = scalar_select %p284, %s283, 3
        %p286 = scmp.lt.s32.totalorder %s35, 0
        %s287 = scalar_select %p286, %s35, 0
        %s288 = sadd.s32 %s287, %s285
        %s289 = scalar_lea.vmem %s4, %s288
        %s290 = sld [smem:[#allocation4 + %s34]]
        %s291 = sld [smem:[#allocation3 + %s34]]
        %v293 = vld [vmem:[%s271] sm:$0xff]
        %v294 = vpack.c.bf16 %v293, %v293
        %v295 = vld [vmem:[%s281] sm:$0xf]
        %v296 = vld [vmem:[%s281 + $0x4] sm:$0xf]
        %v297 = vld [vmem:[%s281 + $0x8] sm:$0xf]
        %v298 = vld [vmem:[%s281 + $0xc] sm:$0xf]
        %v299 = vld [vmem:[%s289] sm:$0x1]
        %v301 = vlaneseq
        %v302 = vshrl.u32 %v301, 7
        %v303 = vsub.s32 0, %v302
        %v304 = vrot.slane %v299, %v303
        %v310 = vunpack.c.l.b16 %v295
        %v311 = vunpack.c.l.b16 %v296
        %v312 = vunpack.c.l.b16 %v297
        %v313 = vunpack.c.l.b16 %v298
        %v314 = vpack.c.b16 %v311, %v310
        %v315 = vpack.c.b16 %v313, %v312
        %vm318 = vcmask 261120
        %v320 = vsel %vm318, %v294, 0
        %322 = vmatprep.subr.bf16.mxu0 0
        %323 = vmatpush1.bf16.msra.mxu0 0
        %324 = vmatprep.subr.bf16.mxu0 0
        %325 = vmatpush1.bf16.msra.mxu0 0
        %326 = vmatprep.subr.bf16.mxu0 0
        %327 = vmatpush1.bf16.msra.mxu0 0
        %328 = vmatprep.subr.bf16.mxu0 0
        %329 = vmatpush1.bf16.msra.mxu0 0
        %330 = vmatprep.subr.bf16.mxu0 0
        %331 = vmatpush1.bf16.msra.mxu0 0
        %332 = vmatprep.subr.bf16.mxu0 0
        %333 = vmatpush1.bf16.msra.mxu0 0
        %334 = vmatprep.subr.bf16.mxu0 0
        %335 = vmatpush1.bf16.msra.mxu0 %v315
        %336 = vmatprep.subr.bf16.mxu0 0
        %337 = vmatpush1.bf16.msra.mxu0 %v314
        %338 = vmatprep.subr.bf16.mxu0 0
        %339 = vmatpush2.bf16.msra.mxu0 0
        %340 = vmatprep.subr.bf16.mxu0 0
        %341 = vmatpush2.bf16.msra.mxu0 0
        %342 = vmatprep.subr.bf16.mxu0 0
        %343 = vmatpush2.bf16.msra.mxu0 0
        %344 = vmatprep.subr.bf16.mxu0 0
        %345 = vmatpush2.bf16.msra.mxu0 0
        %346 = vmatprep.subr.bf16.mxu0 0
        %347 = vmatpush2.bf16.msra.mxu0 0
        %348 = vmatprep.subr.bf16.mxu0 0
        %349 = vmatpush2.bf16.msra.mxu0 0
        %350 = vmatprep.subr.bf16.mxu0 0
        %351 = vmatpush2.bf16.msra.mxu0 0
        %352 = vmatprep.subr.bf16.mxu0 0
        %353 = vmatpush2.bf16.msra.mxu0 0
        %354 = vmatprep.mubr.bf16.mxu0 0
        %355 = vmatmul.mubr.bf16.gmra.mxu0 %v320
        %v356 = vpop.f32.mrf.mxu0
        %v357 = vadd.f32 %v304, %v356
        %v358 = vpop.f32.mrf.mxu0
        %v359 = vpop.f32.mrf.mxu0
        %v360 = vpop.f32.mrf.mxu0
        %361 = vdwg.mxu0
        %vm362 = vcmask 130048
        %363 = vst.msk [vmem:[%s263] sm:$0xff] %vm362, %v357
        %s364 = sand.u32 %s152, 1
        %s365 = scalar_lea.sflag [#allocation6], %s364
        %s366 = sand.u32 %s152, 1
        %s367 = smul.addr %s366, 8
        %s368 = scalar_lea.vmem [#allocation5], %s367
        // Predicated region
        $region33: #{tpu_custom_call.1} parent=31 // pred_check
          %p369 = pneg %p162
        $region34: #{tpu_custom_call.1} parent=31 // pred_check_branch
          %371 = sbr.rel (%p369) target = $region36
        $region35: #{tpu_custom_call.1} parent=31 // pred_region
          %s372 = sld [smem:[#allocation3 + %s34]]
          %s374 = ssub.s32 128, 128
          %375 = vsyncadd %s365, %s374
          %s376 = sadd.s32 %s35, %s36
          %s377 = sadd.s32 %s376, %s372
          %s378 = smul.addr %s377, 128
          %s379 = scalar_lea.hbm %s5, %s378
          %s381 = sshll.u32 %s368, 4
          %s382 = int_to_ptr.vmem [resolvable:$true] %s381
          %384 = dma.vmem_to_hbm [thread:$0]  %s382, 128, %s379, %s365
        $region36: #{tpu_custom_call.1} parent=31 // pred_fallthru
          _
      $region32: #{tpu_custom_call.1} parent=5 // pred_fallthru
        _
      %p385 = scmp.le.s32.totalorder 2, %s24
      // Predicated region
      $region37: #{tpu_custom_call.1} parent=5 // pred_check
        %p386 = pneg %p385
      $region38: #{tpu_custom_call.1} parent=5 // pred_check_branch
        %388 = sbr.rel (%p386) target = $region40
      $region39: #{tpu_custom_call.1} parent=5 // pred_region
        %s389 = ssub.s32 %s24, 2
        // Predicated region
        $region41: #{tpu_custom_call.1} parent=39 // pred_check
          %p390 = pneg %p168
        $region42: #{tpu_custom_call.1} parent=39 // pred_check_branch
          %392 = sbr.rel (%p390) target = $region44
        $region43: #{tpu_custom_call.1} parent=39 // pred_region
          %s393 = sand.u32 %s153, 1
          %s394 = scalar_lea.sflag [#allocation6], %s393
          %s395 = sand.u32 %s153, 1
          %s396 = smul.addr %s395, 8
          %s397 = scalar_lea.vmem [#allocation5], %s396
          %398 = dma.done %s394, 128
        $region44: #{tpu_custom_call.1} parent=39 // pred_fallthru
          _
      $region40: #{tpu_custom_call.1} parent=5 // pred_fallthru
        _
    $region6: #{tpu_custom_call.1} parent=1 // loop_footer
      %s28 = sadd.s32 1, %s24
    $region7: #{tpu_custom_call.1} parent=1 // loop_footer_branch
      %23 = sbr.rel target = $region3
    $region8: #{tpu_custom_call.1} parent=1 // loop_exit
      _
    %399 = vsyncpa [#allocation6], 1
    %s400 = scalar_lea.sflag [#allocation6], 1
    %401 = vsyncpa %s400, 1

</llo_original>
